<compile_context>
chip_gen: v7x
topology: tpu7x:2x2x1
jax: 0.10.0
libtpu: 0.0.40
codegen_flags: <defaults>
</compile_context>

<pallas_src>
import functools

import jax
import jax.numpy as jnp
import numpy as np
from jax import lax
from jax.experimental import pallas as pl
from jax.experimental.pallas import tpu as pltpu

EPS = 1e-6  # torch.nn.functional.pairwise_distance default eps


def _round_up(x, m):
    return ((x + m - 1) // m) * m


def _pick_tile(B, D_pad):
    """Largest pair-tile whose working set fits a conservative 48 MiB VMEM budget
    (v7x has 64 MiB physical per TensorCore; v5e/v6e have 128 MiB)."""
    if B <= 128:
        tile = 128
    elif B <= 512:
        tile = 256
    else:
        tile = 512
    while tile > 128:
        # 2x double-buffered (tile, D_pad) f32 input blocks (row + col)
        # + ~10 (tile, tile) f32 elementwise temporaries.
        need = 4 * tile * D_pad * 4 + 10 * tile * tile * 4
        if need <= 48 * 1024 * 1024:
            break
        tile //= 2
    return tile


def _contrastive_kernel(ib_ref, jb_ref,               # scalar-prefetch (SMEM)
                        row_emb_ref, col_emb_ref,     # (tile, Dp) / (Dp, tile) f32
                        u_ref, v_ref,                 # (tile, 1) / (1, tile) f32 norm+eps strips
                        row_lbl_ref, col_lbl_ref,     # (tile, 1) / (1, tile) int32
                        out_ref,                      # (1, tile) f32 per-pair lane partials
                        *, margin, n_valid, tile, n_blk, use_bf16_gram):
    p = pl.program_id(0)
    ib = ib_ref[p]        # row block index (global)
    jb = jb_ref[p]        # col block index (global), jb >= ib by construction

    x = row_emb_ref[...]                                   # (tile, Dp) f32
    yt = col_emb_ref[...]                                   # (Dp, tile) f32

    if use_bf16_gram:
        # Optional MXU saver (v6e/v7x); f32 accumulation, but cross term loses
        # ~1e-3 relative precision -> keep OFF unless validated for the data.
        gram = jnp.dot(x.astype(jnp.bfloat16), yt.astype(jnp.bfloat16),
                       preferred_element_type=jnp.float32)
    else:
        gram = jnp.dot(x, yt, preferred_element_type=jnp.float32)   # (tile, tile)

    # ||x_i - x_j + eps||^2 = u_i + v_j - 2 * x_i.x_j   (u/v precomputed outside)
    d2 = u_ref[...] + v_ref[...] - 2.0 * gram
    d2 = jnp.maximum(d2, 0.0)
    d = jnp.sqrt(d2)

    same = row_lbl_ref[...] == col_lbl_ref[...]              # (tile,1)==(1,tile)->(tile,tile)
    neg_term = jnp.square(jnp.maximum(margin - d, 0.0))
    loss_tile = jnp.where(same, d2, neg_term)

    # Only diagonal blocks (need i<j) and last-column blocks (need col < n_valid)
    # require any masking; interior blocks take the cheap path.
    needs_mask = (ib == jb) | (jb == n_blk - 1)

    @pl.when(needs_mask)
    def _():
        row_ids = ib * tile + lax.broadcasted_iota(jnp.int32, (tile, 1), 0)
        col_ids = jb * tile + lax.broadcasted_iota(jnp.int32, (1, tile), 1)
        # (row < col) & (col < n_valid) implies row < n_valid.
        valid = (row_ids < col_ids) & (col_ids < n_valid)
        out_ref[...] = jnp.sum(jnp.where(valid, loss_tile, 0.0), axis=0, keepdims=True)

    @pl.when(jnp.logical_not(needs_mask))
    def _():
        out_ref[...] = jnp.sum(loss_tile, axis=0, keepdims=True)


def contrastive_loss(embeddings, target, margin, *, use_bf16_gram=False):
    """Pallas-backed ContrastiveLoss.forward (single device, all-pairs selector)."""
    B, D = embeddings.shape

    D_pad = _round_up(D, 128)
    tile = _pick_tile(B, D_pad)
    B_pad = _round_up(B, tile)
    n_blk = B_pad // tile

    emb = jnp.zeros((B_pad, D_pad), jnp.float32)
    emb = emb.at[:B, :D].set(embeddings.astype(jnp.float32))
    emb_t = emb.T                            # (D_pad, B_pad); one-time XLA transpose so the
                                             # MXU sees a clean (M,K)x(K,N) contraction.

    # Precompute norm/eps strips (folds sq/rowsum/eps terms out of the kernel).
    sq = jnp.sum(emb * emb, axis=1)          # (B_pad,)  zero for padded rows
    rs = jnp.sum(emb, axis=1)                # (B_pad,)
    half_eps2 = 0.5 * float(D) * (EPS * EPS)     # ORIGINAL D for the eps^2 term
    u = (sq + 2.0 * EPS * rs + half_eps2).reshape(B_pad, 1)
    v = (sq - 2.0 * EPS * rs + half_eps2).reshape(1, B_pad)

    tgt = jnp.zeros((B_pad,), jnp.int32).at[:B].set(target.astype(jnp.int32))
    tgt_row = tgt.reshape(B_pad, 1)
    tgt_col = tgt.reshape(1, B_pad)

    # Enumerate only upper-triangular block pairs (static, trace-time).
    ib_np, jb_np = np.triu_indices(n_blk)
    ib_arr = jnp.asarray(ib_np, dtype=jnp.int32)
    jb_arr = jnp.asarray(jb_np, dtype=jnp.int32)
    n_pairs = int(ib_np.shape[0])

    kernel = functools.partial(_contrastive_kernel, margin=float(margin),
                               n_valid=B, tile=tile, n_blk=n_blk,
                               use_bf16_gram=use_bf16_gram)

    grid_spec = pltpu.PrefetchScalarGridSpec(
        num_scalar_prefetch=2,
        grid=(n_pairs,),
        in_specs=[
            pl.BlockSpec((tile, D_pad), lambda p, ib, jb: (ib[p], 0)),   # row embeddings
            pl.BlockSpec((D_pad, tile), lambda p, ib, jb: (0, jb[p])),   # col embeddings (pre-T)
            pl.BlockSpec((tile, 1),     lambda p, ib, jb: (ib[p], 0)),   # u strip
            pl.BlockSpec((1, tile),     lambda p, ib, jb: (0, jb[p])),   # v strip
            pl.BlockSpec((tile, 1),     lambda p, ib, jb: (ib[p], 0)),   # row labels
            pl.BlockSpec((1, tile),     lambda p, ib, jb: (0, jb[p])),   # col labels
        ],
        out_specs=pl.BlockSpec((1, tile), lambda p, ib, jb: (p, 0)),     # lane-dense partials
    )

    vmem_est = 4 * tile * D_pad * 4 + 10 * tile * tile * 4 + (1 << 20)
    vmem_limit = int(min(56 * 1024 * 1024, max(vmem_est, 16 * 1024 * 1024)))

    partials = pl.pallas_call(
        kernel,
        out_shape=jax.ShapeDtypeStruct((n_pairs, tile), jnp.float32),
        grid_spec=grid_spec,
        compiler_params=pltpu.CompilerParams(
            dimension_semantics=("parallel",),   # pairs independent -> v7x 2-TC sharding
            vmem_limit_bytes=vmem_limit,
        ),
        cost_estimate=pl.CostEstimate(
            flops=2 * n_pairs * tile * tile * D_pad,
            transcendentals=n_pairs * tile * tile,
            bytes_accessed=2 * n_pairs * tile * D_pad * 4 + n_pairs * tile * 4,
        ),
    )(ib_arr, jb_arr, emb, emb_t, u, v, tgt_row, tgt_col)

    # Tiny (n_pairs, tile) reduce outside the kernel.
    return jnp.sum(partials)


def _reference_loss(emb, target, margin):
    """Pure-numpy mirror of the PyTorch forward (all-pairs selector)."""
    emb = np.asarray(emb, dtype=np.float64)
    target = np.asarray(target)
    B = emb.shape[0]
    total = 0.0
    for i in range(B):
        for j in range(i + 1, B):
            diff = emb[i] - emb[j] + EPS
            d = np.sqrt(np.sum(diff * diff))
            if target[i] == target[j]:
                total += d * d
            else:
                total += max(margin - d, 0.0) ** 2
    return total


if __name__ == "__main__":
    # CoLES-style batch: 8 "users", 2 sub-sequence embeddings each -> B=16, D=32.
    B, D = 16, 32
    margin = 0.5

    key = jax.random.PRNGKey(0)
    k_emb, _ = jax.random.split(key)
    embeddings = jax.random.normal(k_emb, (B, D), dtype=jnp.float32) * 0.3
    target = jnp.repeat(jnp.arange(B // 2, dtype=jnp.int32), 2)   # (B,)

    loss = contrastive_loss(embeddings, target, margin)
    loss = jax.block_until_ready(loss)

    ref = _reference_loss(np.asarray(embeddings), np.asarray(target), margin)
    assert np.allclose(float(loss), ref, rtol=1e-3, atol=1e-4), (float(loss), ref)

    print("KERNEL_OK")
</pallas_src>

<mosaic_0001>
module attributes {stable_mosaic.version = 11 : i64} {
  func.func @_contrastive_kernel(%arg0: i32, %arg1: memref<1xi32, #tpu.memory_space<smem>>, %arg2: memref<1xi32, #tpu.memory_space<smem>>, %arg3: memref<128x128xf32, #tpu.memory_space<vmem>>, %arg4: memref<128x128xf32, #tpu.memory_space<vmem>>, %arg5: memref<128x1xf32, #tpu.memory_space<vmem>>, %arg6: memref<1x128xf32, #tpu.memory_space<vmem>>, %arg7: memref<128x1xi32, #tpu.memory_space<vmem>>, %arg8: memref<1x128xi32, #tpu.memory_space<vmem>>, %arg9: memref<1x128xf32, #tpu.memory_space<vmem>>) attributes {dimension_semantics = [#tpu.dimension_semantics<parallel>], iteration_bounds = array<i64: 1>, scalar_prefetch = 2 : i64, scratch_operands = 0 : i64, tpu.core_type = #tpu.core_type<tc>, window_params = [{transform_indices = @transform_0, window_bounds = array<i64: 128, 128>}, {transform_indices = @transform_1, window_bounds = array<i64: 128, 128>}, {transform_indices = @transform_2, window_bounds = array<i64: 128, 1>}, {transform_indices = @transform_3, window_bounds = array<i64: 1, 128>}, {transform_indices = @transform_4, window_bounds = array<i64: 128, 1>}, {transform_indices = @transform_5, window_bounds = array<i64: 1, 128>}, {transform_indices = @transform_6, window_bounds = array<i64: 1, 128>}]} {
    %0 = arith.index_cast %arg0 : i32 to index
    %1 = memref.load %arg1[%0] : memref<1xi32, #tpu.memory_space<smem>>
    %2 = arith.index_cast %arg0 : i32 to index
    %3 = memref.load %arg2[%2] : memref<1xi32, #tpu.memory_space<smem>>
    %c0 = arith.constant 0 : index
    %c0_0 = arith.constant 0 : index
    %4 = vector.load %arg3[%c0, %c0_0] : memref<128x128xf32, #tpu.memory_space<vmem>>, vector<128x128xf32>
    %c0_1 = arith.constant 0 : index
    %c0_2 = arith.constant 0 : index
    %5 = vector.load %arg4[%c0_1, %c0_2] : memref<128x128xf32, #tpu.memory_space<vmem>>, vector<128x128xf32>
    %cst = arith.constant dense<0.000000e+00> : vector<128x128xf32>
    %6 = tpu.matmul %4, %5, %cst {dimension_numbers = #tpu.dot_dimension_numbers<[1], [0], [0], [1], [0, 0, 1, 1], [], []>} : vector<128x128xf32>, vector<128x128xf32>, vector<128x128xf32> -> vector<128x128xf32>
    %c0_3 = arith.constant 0 : index
    %c0_4 = arith.constant 0 : index
    %7 = vector.load %arg5[%c0_3, %c0_4] : memref<128x1xf32, #tpu.memory_space<vmem>>, vector<128x1xf32>
    %c0_5 = arith.constant 0 : index
    %c0_6 = arith.constant 0 : index
    %8 = vector.load %arg6[%c0_5, %c0_6] : memref<1x128xf32, #tpu.memory_space<vmem>>, vector<1x128xf32>
    %9 = vector.broadcast %7 : vector<128x1xf32> to vector<128x128xf32>
    %10 = vector.broadcast %8 : vector<1x128xf32> to vector<128x128xf32>
    %11 = arith.addf %9, %10 : vector<128x128xf32>
    %cst_7 = arith.constant 2.000000e+00 : f32
    %12 = vector.broadcast %cst_7 : f32 to vector<128x128xf32>
    %13 = arith.mulf %12, %6 : vector<128x128xf32>
    %14 = arith.subf %11, %13 : vector<128x128xf32>
    %cst_8 = arith.constant 0.000000e+00 : f32
    %15 = vector.broadcast %cst_8 : f32 to vector<128x128xf32>
    %16 = arith.maximumf %14, %15 : vector<128x128xf32>
    %17 = math.sqrt %16 : vector<128x128xf32>
    %c0_9 = arith.constant 0 : index
    %c0_10 = arith.constant 0 : index
    %18 = vector.load %arg7[%c0_9, %c0_10] : memref<128x1xi32, #tpu.memory_space<vmem>>, vector<128x1xi32>
    %c0_11 = arith.constant 0 : index
    %c0_12 = arith.constant 0 : index
    %19 = vector.load %arg8[%c0_11, %c0_12] : memref<1x128xi32, #tpu.memory_space<vmem>>, vector<1x128xi32>
    %20 = vector.broadcast %18 : vector<128x1xi32> to vector<128x128xi32>
    %21 = vector.broadcast %19 : vector<1x128xi32> to vector<128x128xi32>
    %22 = arith.cmpi eq, %20, %21 : vector<128x128xi32>
    %cst_13 = arith.constant 5.000000e-01 : f32
    %23 = vector.broadcast %cst_13 : f32 to vector<128x128xf32>
    %24 = arith.subf %23, %17 : vector<128x128xf32>
    %cst_14 = arith.constant 0.000000e+00 : f32
    %25 = vector.broadcast %cst_14 : f32 to vector<128x128xf32>
    %26 = arith.maximumf %24, %25 : vector<128x128xf32>
    %27 = arith.mulf %26, %26 : vector<128x128xf32>
    %28 = arith.select %22, %16, %27 : vector<128x128xi1>, vector<128x128xf32>
    %29 = arith.cmpi eq, %1, %3 : i32
    %c0_i32 = arith.constant 0 : i32
    %30 = arith.cmpi eq, %3, %c0_i32 : i32
    %31 = arith.ori %29, %30 : i1
    %32 = arith.extui %31 : i1 to i32
    %c0_i32_15 = arith.constant 0 : i32
    %33 = arith.cmpi ne, %32, %c0_i32_15 : i32
    scf.if %33 {
      %c128_i32 = arith.constant 128 : i32
      %37 = arith.muli %1, %c128_i32 : i32
      %38 = tpu.iota {dimensions = array<i32: 0>} : vector<128x1xi32>
      %39 = vector.broadcast %37 : i32 to vector<128x1xi32>
      %40 = arith.addi %39, %38 : vector<128x1xi32>
      %c128_i32_17 = arith.constant 128 : i32
      %41 = arith.muli %3, %c128_i32_17 : i32
      %42 = tpu.iota {dimensions = array<i32: 1>} : vector<1x128xi32>
      %43 = vector.broadcast %41 : i32 to vector<1x128xi32>
      %44 = arith.addi %43, %42 : vector<1x128xi32>
      %45 = vector.broadcast %40 : vector<128x1xi32> to vector<128x128xi32>
      %46 = vector.broadcast %44 : vector<1x128xi32> to vector<128x128xi32>
      %47 = arith.cmpi slt, %45, %46 : vector<128x128xi32>
      %c16_i32 = arith.constant 16 : i32
      %48 = vector.broadcast %c16_i32 : i32 to vector<1x128xi32>
      %49 = arith.cmpi slt, %44, %48 : vector<1x128xi32>
      %50 = vector.broadcast %49 : vector<1x128xi1> to vector<128x128xi1>
      %51 = arith.andi %47, %50 : vector<128x128xi1>
      %cst_18 = arith.constant 0.000000e+00 : f32
      %52 = vector.broadcast %cst_18 : f32 to vector<128x128xf32>
      %53 = arith.select %51, %28, %52 : vector<128x128xi1>, vector<128x128xf32>
      %cst_19 = arith.constant dense<0.000000e+00> : vector<128xf32>
      %54 = vector.multi_reduction <add>, %53, %cst_19 [0] : vector<128x128xf32> to vector<128xf32>
      %55 = vector.shape_cast %54 : vector<128xf32> to vector<1x128xf32>
      %c0_20 = arith.constant 0 : index
      %c0_21 = arith.constant 0 : index
      %56 = vector.load %arg9[%c0_20, %c0_21] : memref<1x128xf32, #tpu.memory_space<vmem>>, vector<1x128xf32>
      tpu.vector_store %arg9[%c0_20, %c0_21], %55 {strides = array<i32>} : memref<1x128xf32, #tpu.memory_space<vmem>>, vector<1x128xf32>,
    } else {
    }
    %true = arith.constant true
    %34 = arith.xori %31, %true : i1
    %35 = arith.extui %34 : i1 to i32
    %c0_i32_16 = arith.constant 0 : i32
    %36 = arith.cmpi ne, %35, %c0_i32_16 : i32
    scf.if %36 {
      %cst_17 = arith.constant dense<0.000000e+00> : vector<128xf32>
      %37 = vector.multi_reduction <add>, %28, %cst_17 [0] : vector<128x128xf32> to vector<128xf32>
      %38 = vector.shape_cast %37 : vector<128xf32> to vector<1x128xf32>
      %c0_18 = arith.constant 0 : index
      %c0_19 = arith.constant 0 : index
      %39 = vector.load %arg9[%c0_18, %c0_19] : memref<1x128xf32, #tpu.memory_space<vmem>>, vector<1x128xf32>
      tpu.vector_store %arg9[%c0_18, %c0_19], %38 {strides = array<i32>} : memref<1x128xf32, #tpu.memory_space<vmem>>, vector<1x128xf32>,
    } else {
    }
    return
  }
  func.func @transform_0(%arg0: i32, %arg1: memref<1xi32, #tpu.memory_space<smem>>, %arg2: memref<1xi32, #tpu.memory_space<smem>>) -> (i32, i32) {
    %0 = arith.index_cast %arg0 : i32 to index
    %1 = memref.load %arg1[%0] : memref<1xi32, #tpu.memory_space<smem>>
    %c0_i32 = arith.constant 0 : i32
    %c0_i32_0 = arith.constant 0 : i32
    return %1, %c0_i32 : i32, i32
  }
  func.func @transform_1(%arg0: i32, %arg1: memref<1xi32, #tpu.memory_space<smem>>, %arg2: memref<1xi32, #tpu.memory_space<smem>>) -> (i32, i32) {
    %0 = arith.index_cast %arg0 : i32 to index
    %1 = memref.load %arg2[%0] : memref<1xi32, #tpu.memory_space<smem>>
    %c0_i32 = arith.constant 0 : i32
    %c0_i32_0 = arith.constant 0 : i32
    return %c0_i32, %1 : i32, i32
  }
  func.func @transform_2(%arg0: i32, %arg1: memref<1xi32, #tpu.memory_space<smem>>, %arg2: memref<1xi32, #tpu.memory_space<smem>>) -> (i32, i32) {
    %0 = arith.index_cast %arg0 : i32 to index
    %1 = memref.load %arg1[%0] : memref<1xi32, #tpu.memory_space<smem>>
    %c0_i32 = arith.constant 0 : i32
    %c0_i32_0 = arith.constant 0 : i32
    return %1, %c0_i32 : i32, i32
  }
  func.func @transform_3(%arg0: i32, %arg1: memref<1xi32, #tpu.memory_space<smem>>, %arg2: memref<1xi32, #tpu.memory_space<smem>>) -> (i32, i32) {
    %0 = arith.index_cast %arg0 : i32 to index
    %1 = memref.load %arg2[%0] : memref<1xi32, #tpu.memory_space<smem>>
    %c0_i32 = arith.constant 0 : i32
    %c0_i32_0 = arith.constant 0 : i32
    return %c0_i32, %1 : i32, i32
  }
  func.func @transform_4(%arg0: i32, %arg1: memref<1xi32, #tpu.memory_space<smem>>, %arg2: memref<1xi32, #tpu.memory_space<smem>>) -> (i32, i32) {
    %0 = arith.index_cast %arg0 : i32 to index
    %1 = memref.load %arg1[%0] : memref<1xi32, #tpu.memory_space<smem>>
    %c0_i32 = arith.constant 0 : i32
    %c0_i32_0 = arith.constant 0 : i32
    return %1, %c0_i32 : i32, i32
  }
  func.func @transform_5(%arg0: i32, %arg1: memref<1xi32, #tpu.memory_space<smem>>, %arg2: memref<1xi32, #tpu.memory_space<smem>>) -> (i32, i32) {
    %0 = arith.index_cast %arg0 : i32 to index
    %1 = memref.load %arg2[%0] : memref<1xi32, #tpu.memory_space<smem>>
    %c0_i32 = arith.constant 0 : i32
    %c0_i32_0 = arith.constant 0 : i32
    return %c0_i32, %1 : i32, i32
  }
  func.func @transform_6(%arg0: i32, %arg1: memref<1xi32, #tpu.memory_space<smem>>, %arg2: memref<1xi32, #tpu.memory_space<smem>>) -> (i32, i32) {
    %c0_i32 = arith.constant 0 : i32
    %c0_i32_0 = arith.constant 0 : i32
    return %arg0, %c0_i32 : i32, i32
  }
}

</mosaic_0001>

<llo_original>
// kernel: tpu_custom_call.1
$region0: #{tpu_custom_call.1}
  #allocation0 [shape = 'u32[]', space=smem, size = 0x4, offset = 0x4, fixed_abs, tag = 'smem constant byte address 0x4 - core index']
  #allocation1 [shape = 'u32[144,128]{1,0:T(1,128)}', space=vmem, size = 0x12000, scoped, tag = 'internal scratch']
  #allocation2 [shape = 's32[1]{0}', space=sflag, size = 0x4, scoped, tag = 'scoped memory for tpu_custom_call.1']
  #allocation3 [shape = 's32[1]{0:T(128)S(6)}', space=smem, size = 0x200, scoped, tag = 'prefetched SMEM operand 0']
  #allocation4 [shape = 's32[1]{0:T(128)S(6)}', space=smem, size = 0x200, scoped, tag = 'prefetched SMEM operand 1']
  %s0 = inlined_call_operand.<no memory space> [shape: s32[1], index: 0, kind: input, shape index: {}]
  %s1 = inlined_call_operand.<no memory space> [shape: s32[1], index: 1, kind: input, shape index: {}]
  %s2 = inlined_call_operand.vmem [shape: f32[128,128], index: 2, kind: input, shape index: {}]
  %s3 = inlined_call_operand.vmem [shape: f32[128,128], index: 3, kind: input, shape index: {}]
  %s4 = inlined_call_operand.vmem [shape: f32[128,1], index: 4, kind: input, shape index: {}]
  %s5 = inlined_call_operand.vmem [shape: f32[1,128], index: 5, kind: input, shape index: {}]
  %s6 = inlined_call_operand.vmem [shape: s32[128,1], index: 6, kind: input, shape index: {}]
  %s7 = inlined_call_operand.vmem [shape: s32[1,128], index: 7, kind: input, shape index: {}]
  %s8 = inlined_call_operand.hbm [shape: f32[1,128], index: 8, kind: output, shape index: {}]
  %s9 = sld [smem:[#allocation0]]
  $region42: #{tpu_custom_call.1} parent=0
    _
  %s11 = ssub.s32 1, %s9
  %s12 = scalar_select 0, %s11, %s9
  %13 = sst [smem:[#allocation3]] %s0
  %14 = sst [smem:[#allocation4]] %s1
  $region1: #{tpu_custom_call.1} parent=0
    #allocation5 [shape = 'u8[512]{0}', space=vmem, size = 0x400, scoped, tag = 'output window, operand 0, single buffered']
    #allocation6 [shape = 's32[1]{0}', space=sflag, size = 0x4, scoped, tag = 'scoped memory for tpu_custom_call.1']
    %15 = vsyncpa [#allocation6], 0
    // Predicated region
    $region2: #{tpu_custom_call.1} parent=1 // pred_check
      _
    $region3: #{tpu_custom_call.1} parent=1 // pred_check_branch
      %17 = sbr.rel (0) target = $region5
    $region4: #{tpu_custom_call.1} parent=1 // pred_region
      %s18 = sld [smem:[#allocation3]]
      %s19 = smul.u32 16, %s18
      %p20 = scmp.lt.s32.totalorder %s19, 15
      %s21 = scalar_select %p20, %s19, 15
      %s22 = smul.addr %s21, 8
      %s23 = scalar_lea.vmem %s2, %s22
      %s24 = sld [smem:[#allocation3]]
      %s25 = smul.u32 16, %s24
    $region5: #{tpu_custom_call.1} parent=1 // pred_fallthru
      _
    // Predicated region
    $region6: #{tpu_custom_call.1} parent=1 // pred_check
      _
    $region7: #{tpu_custom_call.1} parent=1 // pred_check_branch
      %27 = sbr.rel (0) target = $region9
    $region8: #{tpu_custom_call.1} parent=1 // pred_region
      %s28 = sld [smem:[#allocation4]]
      %p29 = scmp.lt.s32.totalorder %s28, 0
      %s30 = scalar_select %p29, %s28, 0
      %s31 = smul.addr %s30, 8
      %s32 = scalar_lea.vmem %s3, %s31
      %s33 = sld [smem:[#allocation4]]
    $region9: #{tpu_custom_call.1} parent=1 // pred_fallthru
      _
    // Predicated region
    $region10: #{tpu_custom_call.1} parent=1 // pred_check
      _
    $region11: #{tpu_custom_call.1} parent=1 // pred_check_branch
      %35 = sbr.rel (0) target = $region13
    $region12: #{tpu_custom_call.1} parent=1 // pred_region
      %s36 = sld [smem:[#allocation3]]
      %s37 = smul.u32 16, %s36
      %p38 = scmp.lt.s32.totalorder %s37, 15
      %s39 = scalar_select %p38, %s37, 15
      %s40 = smul.addr %s39, 8
      %s41 = scalar_lea.vmem %s4, %s40
      %s42 = sld [smem:[#allocation3]]
      %s43 = smul.u32 16, %s42
    $region13: #{tpu_custom_call.1} parent=1 // pred_fallthru
      _
    // Predicated region
    $region14: #{tpu_custom_call.1} parent=1 // pred_check
      _
    $region15: #{tpu_custom_call.1} parent=1 // pred_check_branch
      %45 = sbr.rel (0) target = $region17
    $region16: #{tpu_custom_call.1} parent=1 // pred_region
      %s46 = sld [smem:[#allocation4]]
      %p47 = scmp.lt.s32.totalorder %s46, 0
      %s48 = scalar_select %p47, %s46, 0
      %s49 = scalar_lea.vmem %s5, %s48
      %s50 = sld [smem:[#allocation4]]
    $region17: #{tpu_custom_call.1} parent=1 // pred_fallthru
      _
    // Predicated region
    $region18: #{tpu_custom_call.1} parent=1 // pred_check
      _
    $region19: #{tpu_custom_call.1} parent=1 // pred_check_branch
      %52 = sbr.rel (0) target = $region21
    $region20: #{tpu_custom_call.1} parent=1 // pred_region
      %s53 = sld [smem:[#allocation3]]
      %s54 = smul.u32 16, %s53
      %p55 = scmp.lt.s32.totalorder %s54, 15
      %s56 = scalar_select %p55, %s54, 15
      %s57 = smul.addr %s56, 8
      %s58 = scalar_lea.vmem %s6, %s57
      %s59 = sld [smem:[#allocation3]]
      %s60 = smul.u32 16, %s59
    $region21: #{tpu_custom_call.1} parent=1 // pred_fallthru
      _
    // Predicated region
    $region22: #{tpu_custom_call.1} parent=1 // pred_check
      _
    $region23: #{tpu_custom_call.1} parent=1 // pred_check_branch
      %62 = sbr.rel (0) target = $region25
    $region24: #{tpu_custom_call.1} parent=1 // pred_region
      %s63 = sld [smem:[#allocation4]]
      %p64 = scmp.lt.s32.totalorder %s63, 0
      %s65 = scalar_select %p64, %s63, 0
      %s66 = scalar_lea.vmem %s7, %s65
      %s67 = sld [smem:[#allocation4]]
    $region25: #{tpu_custom_call.1} parent=1 // pred_fallthru
      _
    %s68 = sld [smem:[#allocation3]]
    %s69 = smul.u32 16, %s68
    %p70 = scmp.lt.s32.totalorder %s69, 15
    %s71 = scalar_select %p70, %s69, 15
    %s72 = smul.addr %s71, 8
    %s73 = scalar_lea.vmem %s2, %s72
    %s74 = sld [smem:[#allocation4]]
    %p75 = scmp.lt.s32.totalorder %s74, 0
    %s76 = scalar_select %p75, %s74, 0
    %s77 = smul.addr %s76, 8
    %s78 = scalar_lea.vmem %s3, %s77
    %s79 = sld [smem:[#allocation3]]
    %s80 = smul.u32 16, %s79
    %p81 = scmp.lt.s32.totalorder %s80, 15
    %s82 = scalar_select %p81, %s80, 15
    %s83 = smul.addr %s82, 8
    %s84 = scalar_lea.vmem %s4, %s83
    %s85 = sld [smem:[#allocation4]]
    %p86 = scmp.lt.s32.totalorder %s85, 0
    %s87 = scalar_select %p86, %s85, 0
    %s88 = scalar_lea.vmem %s5, %s87
    %s89 = sld [smem:[#allocation3]]
    %s90 = smul.u32 16, %s89
    %p91 = scmp.lt.s32.totalorder %s90, 15
    %s92 = scalar_select %p91, %s90, 15
    %s93 = smul.addr %s92, 8
    %s94 = scalar_lea.vmem %s6, %s93
    %s95 = sld [smem:[#allocation4]]
    %p96 = scmp.lt.s32.totalorder %s95, 0
    %s97 = scalar_select %p96, %s95, 0
    %s98 = scalar_lea.vmem %s7, %s97
    %s99 = sld [smem:[#allocation3]]
    %s100 = smul.u32 16, %s99
    %p101 = scmp.lt.s32.totalorder %s100, 15
    %s102 = scalar_select %p101, %s100, 15
    %s103 = smul.addr %s102, 8
    %s104 = scalar_lea.vmem %s2, %s103
    %s105 = sld [smem:[#allocation3]]
    %s106 = smul.u32 16, %s105
    %s107 = sld [smem:[#allocation4]]
    %p108 = scmp.lt.s32.totalorder %s107, 0
    %s109 = scalar_select %p108, %s107, 0
    %s110 = smul.addr %s109, 8
    %s111 = scalar_lea.vmem %s3, %s110
    %s112 = sld [smem:[#allocation4]]
    %s113 = sld [smem:[#allocation3]]
    %s114 = smul.u32 16, %s113
    %p115 = scmp.lt.s32.totalorder %s114, 15
    %s116 = scalar_select %p115, %s114, 15
    %s117 = smul.addr %s116, 8
    %s118 = scalar_lea.vmem %s4, %s117
    %s119 = sld [smem:[#allocation3]]
    %s120 = smul.u32 16, %s119
    %s121 = sld [smem:[#allocation4]]
    %p122 = scmp.lt.s32.totalorder %s121, 0
    %s123 = scalar_select %p122, %s121, 0
    %s124 = scalar_lea.vmem %s5, %s123
    %s125 = sld [smem:[#allocation4]]
    %s126 = sld [smem:[#allocation3]]
    %s127 = smul.u32 16, %s126
    %p128 = scmp.lt.s32.totalorder %s127, 15
    %s129 = scalar_select %p128, %s127, 15
    %s130 = smul.addr %s129, 8
    %s131 = scalar_lea.vmem %s6, %s130
    %s132 = sld [smem:[#allocation3]]
    %s133 = smul.u32 16, %s132
    %s134 = sld [smem:[#allocation4]]
    %p135 = scmp.lt.s32.totalorder %s134, 0
    %s136 = scalar_select %p135, %s134, 0
    %s137 = scalar_lea.vmem %s7, %s136
    %s138 = sld [smem:[#allocation4]]
    %s139 = sld [smem:[#allocation3]]
    %s140 = sld [smem:[#allocation4]]
    %v141 = vld [vmem:[%s104] sm:$0xff]
    %v142 = vld [vmem:[%s104 + $0x8] sm:$0xff]
    %v143 = vld [vmem:[%s104 + $0x10] sm:$0xff]
    %v144 = vld [vmem:[%s104 + $0x18] sm:$0xff]
    %v145 = vld [vmem:[%s104 + $0x20] sm:$0xff]
    %v146 = vld [vmem:[%s104 + $0x28] sm:$0xff]
    %v147 = vld [vmem:[%s104 + $0x30] sm:$0xff]
    %v148 = vld [vmem:[%s104 + $0x38] sm:$0xff]
    %v149 = vld [vmem:[%s104 + $0x40] sm:$0xff]
    %v150 = vld [vmem:[%s104 + $0x48] sm:$0xff]
    %v151 = vld [vmem:[%s104 + $0x50] sm:$0xff]
    %v152 = vld [vmem:[%s104 + $0x58] sm:$0xff]
    %v153 = vld [vmem:[%s104 + $0x60] sm:$0xff]
    %v154 = vld [vmem:[%s104 + $0x68] sm:$0xff]
    %v155 = vld [vmem:[%s104 + $0x70] sm:$0xff]
    %v156 = vld [vmem:[%s104 + $0x78] sm:$0xff]
    %v157 = vld [vmem:[%s111] sm:$0xff]
    %v158 = vld [vmem:[%s111 + $0x8] sm:$0xff]
    %v159 = vld [vmem:[%s111 + $0x10] sm:$0xff]
    %v160 = vld [vmem:[%s111 + $0x18] sm:$0xff]
    %v161 = vld [vmem:[%s111 + $0x20] sm:$0xff]
    %v162 = vld [vmem:[%s111 + $0x28] sm:$0xff]
    %v163 = vld [vmem:[%s111 + $0x30] sm:$0xff]
    %v164 = vld [vmem:[%s111 + $0x38] sm:$0xff]
    %v165 = vld [vmem:[%s111 + $0x40] sm:$0xff]
    %v166 = vld [vmem:[%s111 + $0x48] sm:$0xff]
    %v167 = vld [vmem:[%s111 + $0x50] sm:$0xff]
    %v168 = vld [vmem:[%s111 + $0x58] sm:$0xff]
    %v169 = vld [vmem:[%s111 + $0x60] sm:$0xff]
    %v170 = vld [vmem:[%s111 + $0x68] sm:$0xff]
    %v171 = vld [vmem:[%s111 + $0x70] sm:$0xff]
    %v172 = vld [vmem:[%s111 + $0x78] sm:$0xff]
    %173 = vmatprep.subr.mxu0 0.0
    %174 = vmatpush1.msra.mxu0 %v157
    %175 = vmatprep.subr.mxu0 0.0
    %176 = vmatpush1.msra.mxu0 %v158
    %177 = vmatprep.subr.mxu0 0.0
    %178 = vmatpush1.msra.mxu0 %v159
    %179 = vmatprep.subr.mxu0 0.0
    %180 = vmatpush1.msra.mxu0 %v160
    %181 = vmatprep.subr.mxu0 0.0
    %182 = vmatpush1.msra.mxu0 %v161
    %183 = vmatprep.subr.mxu0 0.0
    %184 = vmatpush1.msra.mxu0 %v162
    %185 = vmatprep.subr.mxu0 0.0
    %186 = vmatpush1.msra.mxu0 %v163
    %187 = vmatprep.subr.mxu0 0.0
    %188 = vmatpush1.msra.mxu0 %v164
    %189 = vmatprep.subr.mxu0 0.0
    %190 = vmatpush1.msra.mxu0 %v165
    %191 = vmatprep.subr.mxu0 0.0
    %192 = vmatpush1.msra.mxu0 %v166
    %193 = vmatprep.subr.mxu0 0.0
    %194 = vmatpush1.msra.mxu0 %v167
    %195 = vmatprep.subr.mxu0 0.0
    %196 = vmatpush1.msra.mxu0 %v168
    %197 = vmatprep.subr.mxu0 0.0
    %198 = vmatpush1.msra.mxu0 %v169
    %199 = vmatprep.subr.mxu0 0.0
    %200 = vmatpush1.msra.mxu0 %v170
    %201 = vmatprep.subr.mxu0 0.0
    %202 = vmatpush1.msra.mxu0 %v171
    %203 = vmatprep.subr.mxu0 0.0
    %204 = vmatpush1.msra.mxu0 %v172
    %205 = vmatprep.subr.mxu0 0.0
    %206 = vmatpush1.msra.mxu0 0.0
    %207 = vmatprep.subr.mxu0 0.0
    %208 = vmatpush1.msra.mxu0 0.0
    %209 = vmatprep.subr.mxu0 0.0
    %210 = vmatpush1.msra.mxu0 0.0
    %211 = vmatprep.subr.mxu0 0.0
    %212 = vmatpush1.msra.mxu0 0.0
    %213 = vmatprep.subr.mxu0 0.0
    %214 = vmatpush1.msra.mxu0 0.0
    %215 = vmatprep.subr.mxu0 0.0
    %216 = vmatpush1.msra.mxu0 0.0
    %217 = vmatprep.subr.mxu0 0.0
    %218 = vmatpush1.msra.mxu0 0.0
    %219 = vmatprep.subr.mxu0 0.0
    %220 = vmatpush1.msra.mxu0 0.0
    %221 = vmatprep.subr.mxu0 0.0
    %222 = vmatpush1.msra.mxu0 0.0
    %223 = vmatprep.subr.mxu0 0.0
    %224 = vmatpush1.msra.mxu0 0.0
    %225 = vmatprep.subr.mxu0 0.0
    %226 = vmatpush1.msra.mxu0 0.0
    %227 = vmatprep.subr.mxu0 0.0
    %228 = vmatpush1.msra.mxu0 0.0
    %229 = vmatprep.subr.mxu0 0.0
    %230 = vmatpush1.msra.mxu0 0.0
    %231 = vmatprep.subr.mxu0 0.0
    %232 = vmatpush1.msra.mxu0 0.0
    %233 = vmatprep.subr.mxu0 0.0
    %234 = vmatpush1.msra.mxu0 0.0
    %235 = vmatprep.subr.mxu0 0.0
    %236 = vmatpush1.msra.mxu0 0.0
    %237 = vmatprep.mubr.f32.mxu0 0.0
    %238 = vmatmul.mubr.f32.gmra.mrb[0].mxu0 %v141
    %v239 = vpop.f32.mrb[0].mxu0
    %v240 = vadd.f32 0.0, %v239
    %v241 = vpop.f32.mrb[0].mxu0
    %242 = vmatprep.mubr.f32.mxu0 0.0
    %243 = vmatmul.mubr.f32.gmra.mrb[0].mxu0 %v142
    %v244 = vpop.f32.mrb[0].mxu0
    %v245 = vadd.f32 0.0, %v244
    %v246 = vpop.f32.mrb[0].mxu0
    %247 = vmatprep.mubr.f32.mxu0 0.0
    %248 = vmatmul.mubr.f32.gmra.mrb[0].mxu0 %v143
    %v249 = vpop.f32.mrb[0].mxu0
    %v250 = vadd.f32 0.0, %v249
    %v251 = vpop.f32.mrb[0].mxu0
    %252 = vmatprep.mubr.f32.mxu0 0.0
    %253 = vmatmul.mubr.f32.gmra.mrb[0].mxu0 %v144
    %v254 = vpop.f32.mrb[0].mxu0
    %v255 = vadd.f32 0.0, %v254
    %v256 = vpop.f32.mrb[0].mxu0
    %257 = vmatprep.mubr.f32.mxu0 0.0
    %258 = vmatmul.mubr.f32.gmra.mrb[0].mxu0 %v145
    %v259 = vpop.f32.mrb[0].mxu0
    %v260 = vadd.f32 0.0, %v259
    %v261 = vpop.f32.mrb[0].mxu0
    %262 = vmatprep.mubr.f32.mxu0 0.0
    %263 = vmatmul.mubr.f32.gmra.mrb[0].mxu0 %v146
    %v264 = vpop.f32.mrb[0].mxu0
    %v265 = vadd.f32 0.0, %v264
    %v266 = vpop.f32.mrb[0].mxu0
    %267 = vmatprep.mubr.f32.mxu0 0.0
    %268 = vmatmul.mubr.f32.gmra.mrb[0].mxu0 %v147
    %v269 = vpop.f32.mrb[0].mxu0
    %v270 = vadd.f32 0.0, %v269
    %v271 = vpop.f32.mrb[0].mxu0
    %272 = vmatprep.mubr.f32.mxu0 0.0
    %273 = vmatmul.mubr.f32.gmra.mrb[0].mxu0 %v148
    %v274 = vpop.f32.mrb[0].mxu0
    %v275 = vadd.f32 0.0, %v274
    %v276 = vpop.f32.mrb[0].mxu0
    %277 = vmatprep.mubr.f32.mxu0 0.0
    %278 = vmatmul.mubr.f32.gmra.mrb[0].mxu0 %v149
    %v279 = vpop.f32.mrb[0].mxu0
    %v280 = vadd.f32 0.0, %v279
    %v281 = vpop.f32.mrb[0].mxu0
    %282 = vmatprep.mubr.f32.mxu0 0.0
    %283 = vmatmul.mubr.f32.gmra.mrb[0].mxu0 %v150
    %v284 = vpop.f32.mrb[0].mxu0
    %v285 = vadd.f32 0.0, %v284
    %v286 = vpop.f32.mrb[0].mxu0
    %287 = vmatprep.mubr.f32.mxu0 0.0
    %288 = vmatmul.mubr.f32.gmra.mrb[0].mxu0 %v151
    %v289 = vpop.f32.mrb[0].mxu0
    %v290 = vadd.f32 0.0, %v289
    %v291 = vpop.f32.mrb[0].mxu0
    %292 = vmatprep.mubr.f32.mxu0 0.0
    %293 = vmatmul.mubr.f32.gmra.mrb[0].mxu0 %v152
    %v294 = vpop.f32.mrb[0].mxu0
    %v295 = vadd.f32 0.0, %v294
    %v296 = vpop.f32.mrb[0].mxu0
    %297 = vmatprep.mubr.f32.mxu0 0.0
    %298 = vmatmul.mubr.f32.gmra.mrb[0].mxu0 %v153
    %v299 = vpop.f32.mrb[0].mxu0
    %v300 = vadd.f32 0.0, %v299
    %v301 = vpop.f32.mrb[0].mxu0
    %302 = vmatprep.mubr.f32.mxu0 0.0
    %303 = vmatmul.mubr.f32.gmra.mrb[0].mxu0 %v154
    %v304 = vpop.f32.mrb[0].mxu0
    %v305 = vadd.f32 0.0, %v304
    %v306 = vpop.f32.mrb[0].mxu0
    %307 = vmatprep.mubr.f32.mxu0 0.0
    %308 = vmatmul.mubr.f32.gmra.mrb[0].mxu0 %v155
    %v309 = vpop.f32.mrb[0].mxu0
    %v310 = vadd.f32 0.0, %v309
    %v311 = vpop.f32.mrb[0].mxu0
    %312 = vmatprep.mubr.f32.mxu0 0.0
    %313 = vmatmul.mubr.f32.gmra.mrb[0].mxu0 %v156
    %v314 = vpop.f32.mrb[0].mxu0
    %v315 = vadd.f32 0.0, %v314
    %v316 = vpop.f32.mrb[0].mxu0
    %317 = vdwg.mxu0
    %v318 = vld [vmem:[%s118] sm:$0xff]
    %v319 = vld [vmem:[%s118 + $0x8] sm:$0xff]
    %v320 = vld [vmem:[%s118 + $0x10] sm:$0xff]
    %v321 = vld [vmem:[%s118 + $0x18] sm:$0xff]
    %v322 = vld [vmem:[%s118 + $0x20] sm:$0xff]
    %v323 = vld [vmem:[%s118 + $0x28] sm:$0xff]
    %v324 = vld [vmem:[%s118 + $0x30] sm:$0xff]
    %v325 = vld [vmem:[%s118 + $0x38] sm:$0xff]
    %v326 = vld [vmem:[%s118 + $0x40] sm:$0xff]
    %v327 = vld [vmem:[%s118 + $0x48] sm:$0xff]
    %v328 = vld [vmem:[%s118 + $0x50] sm:$0xff]
    %v329 = vld [vmem:[%s118 + $0x58] sm:$0xff]
    %v330 = vld [vmem:[%s118 + $0x60] sm:$0xff]
    %v331 = vld [vmem:[%s118 + $0x68] sm:$0xff]
    %v332 = vld [vmem:[%s118 + $0x70] sm:$0xff]
    %v333 = vld [vmem:[%s118 + $0x78] sm:$0xff]
    %v334 = vld [vmem:[%s124] sm:$0x1]
    %336 = vset.pattern.permute.xlu0 0
    %337 = vperm.xlu0 %336, %v318
    %v338 = vpop.permute.xlu0 %337
    %341 = vset.pattern.permute.xlu0 0
    %342 = vperm.xlu0 %341, %v319
    %v343 = vpop.permute.xlu0 %342
    %346 = vset.pattern.permute.xlu0 0
    %347 = vperm.xlu0 %346, %v320
    %v348 = vpop.permute.xlu0 %347
    %351 = vset.pattern.permute.xlu0 0
    %352 = vperm.xlu0 %351, %v321
    %v353 = vpop.permute.xlu0 %352
    %356 = vset.pattern.permute.xlu0 0
    %357 = vperm.xlu0 %356, %v322
    %v358 = vpop.permute.xlu0 %357
    %361 = vset.pattern.permute.xlu0 0
    %362 = vperm.xlu0 %361, %v323
    %v363 = vpop.permute.xlu0 %362
    %366 = vset.pattern.permute.xlu0 0
    %367 = vperm.xlu0 %366, %v324
    %v368 = vpop.permute.xlu0 %367
    %371 = vset.pattern.permute.xlu0 0
    %372 = vperm.xlu0 %371, %v325
    %v373 = vpop.permute.xlu0 %372
    %376 = vset.pattern.permute.xlu0 0
    %377 = vperm.xlu0 %376, %v326
    %v378 = vpop.permute.xlu0 %377
    %381 = vset.pattern.permute.xlu0 0
    %382 = vperm.xlu0 %381, %v327
    %v383 = vpop.permute.xlu0 %382
    %386 = vset.pattern.permute.xlu0 0
    %387 = vperm.xlu0 %386, %v328
    %v388 = vpop.permute.xlu0 %387
    %391 = vset.pattern.permute.xlu0 0
    %392 = vperm.xlu0 %391, %v329
    %v393 = vpop.permute.xlu0 %392
    %396 = vset.pattern.permute.xlu0 0
    %397 = vperm.xlu0 %396, %v330
    %v398 = vpop.permute.xlu0 %397
    %401 = vset.pattern.permute.xlu0 0
    %402 = vperm.xlu0 %401, %v331
    %v403 = vpop.permute.xlu0 %402
    %406 = vset.pattern.permute.xlu0 0
    %407 = vperm.xlu0 %406, %v332
    %v408 = vpop.permute.xlu0 %407
    %411 = vset.pattern.permute.xlu0 0
    %412 = vperm.xlu0 %411, %v333
    %v413 = vpop.permute.xlu0 %412
    %v416 = vlaneseq
    %v417 = vshrl.u32 %v416, 7
    %v418 = vsub.s32 0, %v417
    %v419 = vrot.slane %v334, %v418
    %v421 = vadd.f32 %v338, %v419
    %v422 = vadd.f32 %v343, %v419
    %v423 = vadd.f32 %v348, %v419
    %v424 = vadd.f32 %v353, %v419
    %v425 = vadd.f32 %v358, %v419
    %v426 = vadd.f32 %v363, %v419
    %v427 = vadd.f32 %v368, %v419
    %v428 = vadd.f32 %v373, %v419
    %v429 = vadd.f32 %v378, %v419
    %v430 = vadd.f32 %v383, %v419
    %v431 = vadd.f32 %v388, %v419
    %v432 = vadd.f32 %v393, %v419
    %v433 = vadd.f32 %v398, %v419
    %v434 = vadd.f32 %v403, %v419
    %v435 = vadd.f32 %v408, %v419
    %v436 = vadd.f32 %v413, %v419
    %v437 = vmul.f32 %v240, 2.0
    %v438 = vmul.f32 %v245, 2.0
    %v439 = vmul.f32 %v250, 2.0
    %v440 = vmul.f32 %v255, 2.0
    %v441 = vmul.f32 %v260, 2.0
    %v442 = vmul.f32 %v265, 2.0
    %v443 = vmul.f32 %v270, 2.0
    %v444 = vmul.f32 %v275, 2.0
    %v445 = vmul.f32 %v280, 2.0
    %v446 = vmul.f32 %v285, 2.0
    %v447 = vmul.f32 %v290, 2.0
    %v448 = vmul.f32 %v295, 2.0
    %v449 = vmul.f32 %v300, 2.0
    %v450 = vmul.f32 %v305, 2.0
    %v451 = vmul.f32 %v310, 2.0
    %v452 = vmul.f32 %v315, 2.0
    %v453 = vsub.f32 %v421, %v437
    %v454 = vsub.f32 %v422, %v438
    %v455 = vsub.f32 %v423, %v439
    %v456 = vsub.f32 %v424, %v440
    %v457 = vsub.f32 %v425, %v441
    %v458 = vsub.f32 %v426, %v442
    %v459 = vsub.f32 %v427, %v443
    %v460 = vsub.f32 %v428, %v444
    %v461 = vsub.f32 %v429, %v445
    %v462 = vsub.f32 %v430, %v446
    %v463 = vsub.f32 %v431, %v447
    %v464 = vsub.f32 %v432, %v448
    %v465 = vsub.f32 %v433, %v449
    %v466 = vsub.f32 %v434, %v450
    %v467 = vsub.f32 %v435, %v451
    %v468 = vsub.f32 %v436, %v452
    %v469 = vmax.f32 %v453, 0.0
    %v470 = vmax.f32 %v454, 0.0
    %v471 = vmax.f32 %v455, 0.0
    %v472 = vmax.f32 %v456, 0.0
    %v473 = vmax.f32 %v457, 0.0
    %v474 = vmax.f32 %v458, 0.0
    %v475 = vmax.f32 %v459, 0.0
    %v476 = vmax.f32 %v460, 0.0
    %v477 = vmax.f32 %v461, 0.0
    %v478 = vmax.f32 %v462, 0.0
    %v479 = vmax.f32 %v463, 0.0
    %v480 = vmax.f32 %v464, 0.0
    %v481 = vmax.f32 %v465, 0.0
    %v482 = vmax.f32 %v466, 0.0
    %v483 = vmax.f32 %v467, 0.0
    %v484 = vmax.f32 %v468, 0.0
    %v485 = vrsqrt.pop %v469
    %v486 = vmul.f32 %v469, %v485
    %vm487 = vcmp.eq.f32.partialorder %v469, inf
    %v488 = vsel %vm487, %v469, %v486
    %vm489 = vcmp.eq.f32.partialorder %v469, 0.0
    %v490 = vand.u32 %v469, 2147483648
    %v491 = vsel %vm489, %v490, %v488
    %v492 = vrsqrt.pop %v470
    %v493 = vmul.f32 %v470, %v492
    %vm494 = vcmp.eq.f32.partialorder %v470, inf
    %v495 = vsel %vm494, %v470, %v493
    %vm496 = vcmp.eq.f32.partialorder %v470, 0.0
    %v497 = vand.u32 %v470, 2147483648
    %v498 = vsel %vm496, %v497, %v495
    %v499 = vrsqrt.pop %v471
    %v500 = vmul.f32 %v471, %v499
    %vm501 = vcmp.eq.f32.partialorder %v471, inf
    %v502 = vsel %vm501, %v471, %v500
    %vm503 = vcmp.eq.f32.partialorder %v471, 0.0
    %v504 = vand.u32 %v471, 2147483648
    %v505 = vsel %vm503, %v504, %v502
    %v506 = vrsqrt.pop %v472
    %v507 = vmul.f32 %v472, %v506
    %vm508 = vcmp.eq.f32.partialorder %v472, inf
    %v509 = vsel %vm508, %v472, %v507
    %vm510 = vcmp.eq.f32.partialorder %v472, 0.0
    %v511 = vand.u32 %v472, 2147483648
    %v512 = vsel %vm510, %v511, %v509
    %v513 = vrsqrt.pop %v473
    %v514 = vmul.f32 %v473, %v513
    %vm515 = vcmp.eq.f32.partialorder %v473, inf
    %v516 = vsel %vm515, %v473, %v514
    %vm517 = vcmp.eq.f32.partialorder %v473, 0.0
    %v518 = vand.u32 %v473, 2147483648
    %v519 = vsel %vm517, %v518, %v516
    %v520 = vrsqrt.pop %v474
    %v521 = vmul.f32 %v474, %v520
    %vm522 = vcmp.eq.f32.partialorder %v474, inf
    %v523 = vsel %vm522, %v474, %v521
    %vm524 = vcmp.eq.f32.partialorder %v474, 0.0
    %v525 = vand.u32 %v474, 2147483648
    %v526 = vsel %vm524, %v525, %v523
    %v527 = vrsqrt.pop %v475
    %v528 = vmul.f32 %v475, %v527
    %vm529 = vcmp.eq.f32.partialorder %v475, inf
    %v530 = vsel %vm529, %v475, %v528
    %vm531 = vcmp.eq.f32.partialorder %v475, 0.0
    %v532 = vand.u32 %v475, 2147483648
    %v533 = vsel %vm531, %v532, %v530
    %v534 = vrsqrt.pop %v476
    %v535 = vmul.f32 %v476, %v534
    %vm536 = vcmp.eq.f32.partialorder %v476, inf
    %v537 = vsel %vm536, %v476, %v535
    %vm538 = vcmp.eq.f32.partialorder %v476, 0.0
    %v539 = vand.u32 %v476, 2147483648
    %v540 = vsel %vm538, %v539, %v537
    %v541 = vrsqrt.pop %v477
    %v542 = vmul.f32 %v477, %v541
    %vm543 = vcmp.eq.f32.partialorder %v477, inf
    %v544 = vsel %vm543, %v477, %v542
    %vm545 = vcmp.eq.f32.partialorder %v477, 0.0
    %v546 = vand.u32 %v477, 2147483648
    %v547 = vsel %vm545, %v546, %v544
    %v548 = vrsqrt.pop %v478
    %v549 = vmul.f32 %v478, %v548
    %vm550 = vcmp.eq.f32.partialorder %v478, inf
    %v551 = vsel %vm550, %v478, %v549
    %vm552 = vcmp.eq.f32.partialorder %v478, 0.0
    %v553 = vand.u32 %v478, 2147483648
    %v554 = vsel %vm552, %v553, %v551
    %v555 = vrsqrt.pop %v479
    %v556 = vmul.f32 %v479, %v555
    %vm557 = vcmp.eq.f32.partialorder %v479, inf
    %v558 = vsel %vm557, %v479, %v556
    %vm559 = vcmp.eq.f32.partialorder %v479, 0.0
    %v560 = vand.u32 %v479, 2147483648
    %v561 = vsel %vm559, %v560, %v558
    %v562 = vrsqrt.pop %v480
    %v563 = vmul.f32 %v480, %v562
    %vm564 = vcmp.eq.f32.partialorder %v480, inf
    %v565 = vsel %vm564, %v480, %v563
    %vm566 = vcmp.eq.f32.partialorder %v480, 0.0
    %v567 = vand.u32 %v480, 2147483648
    %v568 = vsel %vm566, %v567, %v565
    %v569 = vrsqrt.pop %v481
    %v570 = vmul.f32 %v481, %v569
    %vm571 = vcmp.eq.f32.partialorder %v481, inf
    %v572 = vsel %vm571, %v481, %v570
    %vm573 = vcmp.eq.f32.partialorder %v481, 0.0
    %v574 = vand.u32 %v481, 2147483648
    %v575 = vsel %vm573, %v574, %v572
    %v576 = vrsqrt.pop %v482
    %v577 = vmul.f32 %v482, %v576
    %vm578 = vcmp.eq.f32.partialorder %v482, inf
    %v579 = vsel %vm578, %v482, %v577
    %vm580 = vcmp.eq.f32.partialorder %v482, 0.0
    %v581 = vand.u32 %v482, 2147483648
    %v582 = vsel %vm580, %v581, %v579
    %v583 = vrsqrt.pop %v483
    %v584 = vmul.f32 %v483, %v583
    %vm585 = vcmp.eq.f32.partialorder %v483, inf
    %v586 = vsel %vm585, %v483, %v584
    %vm587 = vcmp.eq.f32.partialorder %v483, 0.0
    %v588 = vand.u32 %v483, 2147483648
    %v589 = vsel %vm587, %v588, %v586
    %v590 = vrsqrt.pop %v484
    %v591 = vmul.f32 %v484, %v590
    %vm592 = vcmp.eq.f32.partialorder %v484, inf
    %v593 = vsel %vm592, %v484, %v591
    %vm594 = vcmp.eq.f32.partialorder %v484, 0.0
    %v595 = vand.u32 %v484, 2147483648
    %v596 = vsel %vm594, %v595, %v593
    %v597 = vld [vmem:[%s131] sm:$0xff]
    %v598 = vld [vmem:[%s131 + $0x8] sm:$0xff]
    %v599 = vld [vmem:[%s131 + $0x10] sm:$0xff]
    %v600 = vld [vmem:[%s131 + $0x18] sm:$0xff]
    %v601 = vld [vmem:[%s131 + $0x20] sm:$0xff]
    %v602 = vld [vmem:[%s131 + $0x28] sm:$0xff]
    %v603 = vld [vmem:[%s131 + $0x30] sm:$0xff]
    %v604 = vld [vmem:[%s131 + $0x38] sm:$0xff]
    %v605 = vld [vmem:[%s131 + $0x40] sm:$0xff]
    %v606 = vld [vmem:[%s131 + $0x48] sm:$0xff]
    %v607 = vld [vmem:[%s131 + $0x50] sm:$0xff]
    %v608 = vld [vmem:[%s131 + $0x58] sm:$0xff]
    %v609 = vld [vmem:[%s131 + $0x60] sm:$0xff]
    %v610 = vld [vmem:[%s131 + $0x68] sm:$0xff]
    %v611 = vld [vmem:[%s131 + $0x70] sm:$0xff]
    %v612 = vld [vmem:[%s131 + $0x78] sm:$0xff]
    %v613 = vld [vmem:[%s137] sm:$0x1]
    %614 = vset.pattern.permute.xlu0 0
    %615 = vperm.xlu0 %614, %v597
    %v616 = vpop.permute.xlu0 %615
    %617 = vset.pattern.permute.xlu0 0
    %618 = vperm.xlu0 %617, %v598
    %v619 = vpop.permute.xlu0 %618
    %620 = vset.pattern.permute.xlu0 0
    %621 = vperm.xlu0 %620, %v599
    %v622 = vpop.permute.xlu0 %621
    %623 = vset.pattern.permute.xlu0 0
    %624 = vperm.xlu0 %623, %v600
    %v625 = vpop.permute.xlu0 %624
    %626 = vset.pattern.permute.xlu0 0
    %627 = vperm.xlu0 %626, %v601
    %v628 = vpop.permute.xlu0 %627
    %629 = vset.pattern.permute.xlu0 0
    %630 = vperm.xlu0 %629, %v602
    %v631 = vpop.permute.xlu0 %630
    %632 = vset.pattern.permute.xlu0 0
    %633 = vperm.xlu0 %632, %v603
    %v634 = vpop.permute.xlu0 %633
    %635 = vset.pattern.permute.xlu0 0
    %636 = vperm.xlu0 %635, %v604
    %v637 = vpop.permute.xlu0 %636
    %638 = vset.pattern.permute.xlu0 0
    %639 = vperm.xlu0 %638, %v605
    %v640 = vpop.permute.xlu0 %639
    %641 = vset.pattern.permute.xlu0 0
    %642 = vperm.xlu0 %641, %v606
    %v643 = vpop.permute.xlu0 %642
    %644 = vset.pattern.permute.xlu0 0
    %645 = vperm.xlu0 %644, %v607
    %v646 = vpop.permute.xlu0 %645
    %647 = vset.pattern.permute.xlu0 0
    %648 = vperm.xlu0 %647, %v608
    %v649 = vpop.permute.xlu0 %648
    %650 = vset.pattern.permute.xlu0 0
    %651 = vperm.xlu0 %650, %v609
    %v652 = vpop.permute.xlu0 %651
    %653 = vset.pattern.permute.xlu0 0
    %654 = vperm.xlu0 %653, %v610
    %v655 = vpop.permute.xlu0 %654
    %656 = vset.pattern.permute.xlu0 0
    %657 = vperm.xlu0 %656, %v611
    %v658 = vpop.permute.xlu0 %657
    %659 = vset.pattern.permute.xlu0 0
    %660 = vperm.xlu0 %659, %v612
    %v661 = vpop.permute.xlu0 %660
    %v662 = vlaneseq
    %v663 = vshrl.u32 %v662, 7
    %v664 = vsub.s32 0, %v663
    %v665 = vrot.slane %v613, %v664
    %vm666 = vcmp.eq.s32.totalorder %v616, %v665
    %vm667 = vcmp.eq.s32.totalorder %v619, %v665
    %vm668 = vcmp.eq.s32.totalorder %v622, %v665
    %vm669 = vcmp.eq.s32.totalorder %v625, %v665
    %vm670 = vcmp.eq.s32.totalorder %v628, %v665
    %vm671 = vcmp.eq.s32.totalorder %v631, %v665
    %vm672 = vcmp.eq.s32.totalorder %v634, %v665
    %vm673 = vcmp.eq.s32.totalorder %v637, %v665
    %vm674 = vcmp.eq.s32.totalorder %v640, %v665
    %vm675 = vcmp.eq.s32.totalorder %v643, %v665
    %vm676 = vcmp.eq.s32.totalorder %v646, %v665
    %vm677 = vcmp.eq.s32.totalorder %v649, %v665
    %vm678 = vcmp.eq.s32.totalorder %v652, %v665
    %vm679 = vcmp.eq.s32.totalorder %v655, %v665
    %vm680 = vcmp.eq.s32.totalorder %v658, %v665
    %vm681 = vcmp.eq.s32.totalorder %v661, %v665
    %v682 = vsub.f32 0.5, %v491
    %v683 = vsub.f32 0.5, %v498
    %v684 = vsub.f32 0.5, %v505
    %v685 = vsub.f32 0.5, %v512
    %v686 = vsub.f32 0.5, %v519
    %v687 = vsub.f32 0.5, %v526
    %v688 = vsub.f32 0.5, %v533
    %v689 = vsub.f32 0.5, %v540
    %v690 = vsub.f32 0.5, %v547
    %v691 = vsub.f32 0.5, %v554
    %v692 = vsub.f32 0.5, %v561
    %v693 = vsub.f32 0.5, %v568
    %v694 = vsub.f32 0.5, %v575
    %v695 = vsub.f32 0.5, %v582
    %v696 = vsub.f32 0.5, %v589
    %v697 = vsub.f32 0.5, %v596
    %v698 = vmax.f32 %v682, 0.0
    %v699 = vmax.f32 %v683, 0.0
    %v700 = vmax.f32 %v684, 0.0
    %v701 = vmax.f32 %v685, 0.0
    %v702 = vmax.f32 %v686, 0.0
    %v703 = vmax.f32 %v687, 0.0
    %v704 = vmax.f32 %v688, 0.0
    %v705 = vmax.f32 %v689, 0.0
    %v706 = vmax.f32 %v690, 0.0
    %v707 = vmax.f32 %v691, 0.0
    %v708 = vmax.f32 %v692, 0.0
    %v709 = vmax.f32 %v693, 0.0
    %v710 = vmax.f32 %v694, 0.0
    %v711 = vmax.f32 %v695, 0.0
    %v712 = vmax.f32 %v696, 0.0
    %v713 = vmax.f32 %v697, 0.0
    %v714 = vmul.f32 %v698, %v698
    %v715 = vmul.f32 %v699, %v699
    %v716 = vmul.f32 %v700, %v700
    %v717 = vmul.f32 %v701, %v701
    %v718 = vmul.f32 %v702, %v702
    %v719 = vmul.f32 %v703, %v703
    %v720 = vmul.f32 %v704, %v704
    %v721 = vmul.f32 %v705, %v705
    %v722 = vmul.f32 %v706, %v706
    %v723 = vmul.f32 %v707, %v707
    %v724 = vmul.f32 %v708, %v708
    %v725 = vmul.f32 %v709, %v709
    %v726 = vmul.f32 %v710, %v710
    %v727 = vmul.f32 %v711, %v711
    %v728 = vmul.f32 %v712, %v712
    %v729 = vmul.f32 %v713, %v713
    %v730 = vsel %vm666, %v469, %v714
    %v731 = vsel %vm667, %v470, %v715
    %v732 = vsel %vm668, %v471, %v716
    %v733 = vsel %vm669, %v472, %v717
    %v734 = vsel %vm670, %v473, %v718
    %v735 = vsel %vm671, %v474, %v719
    %v736 = vsel %vm672, %v475, %v720
    %v737 = vsel %vm673, %v476, %v721
    %v738 = vsel %vm674, %v477, %v722
    %v739 = vsel %vm675, %v478, %v723
    %v740 = vsel %vm676, %v479, %v724
    %v741 = vsel %vm677, %v480, %v725
    %v742 = vsel %vm678, %v481, %v726
    %v743 = vsel %vm679, %v482, %v727
    %v744 = vsel %vm680, %v483, %v728
    %v745 = vsel %vm681, %v484, %v729
    %p746 = scmp.eq.s32.totalorder %s139, %s140
    %p747 = scmp.eq.s32.totalorder %s140, 0
    %p748 = por %p746, %p747
    // Predicated region
    $region26: #{tpu_custom_call.1} parent=1 // pred_check
      %p749 = pneg %p748
    $region27: #{tpu_custom_call.1} parent=1 // pred_check_branch
      %751 = sbr.rel (%p749) target = $region29
    $region28: #{tpu_custom_call.1} parent=1 // pred_region
      %s752 = smul.u32 %s139, 128
      %v753 = vlaneseq
      %v754 = vshrl.u32 %v753, 7
      %v755 = vadd.s32 %v754, 8
      %v756 = vadd.s32 %v754, 16
      %v757 = vadd.s32 %v754, 24
      %v758 = vadd.s32 %v754, 32
      %v759 = vadd.s32 %v754, 40
      %v760 = vadd.s32 %v754, 48
      %v761 = vadd.s32 %v754, 56
      %v762 = vadd.s32 %v754, 64
      %v763 = vadd.s32 %v754, 72
      %v764 = vadd.s32 %v754, 80
      %v765 = vadd.s32 %v754, 88
      %v766 = vadd.s32 %v754, 96
      %v767 = vadd.s32 %v754, 104
      %v768 = vadd.s32 %v754, 112
      %v769 = vadd.s32 %v754, 120
      %v770 = vstv %s752
      %v771 = vadd.s32 %v770, %v754
      %v772 = vadd.s32 %v770, %v755
      %v773 = vadd.s32 %v770, %v756
      %v774 = vadd.s32 %v770, %v757
      %v775 = vadd.s32 %v770, %v758
      %v776 = vadd.s32 %v770, %v759
      %v777 = vadd.s32 %v770, %v760
      %v778 = vadd.s32 %v770, %v761
      %v779 = vadd.s32 %v770, %v762
      %v780 = vadd.s32 %v770, %v763
      %v781 = vadd.s32 %v770, %v764
      %v782 = vadd.s32 %v770, %v765
      %v783 = vadd.s32 %v770, %v766
      %v784 = vadd.s32 %v770, %v767
      %v785 = vadd.s32 %v770, %v768
      %v786 = vadd.s32 %v770, %v769
      %s787 = smul.u32 %s140, 128
      %v788 = vlaneseq
      %v789 = vand.u32 %v788, 127
      %v790 = vstv %s787
      %v791 = vadd.s32 %v790, %v789
      %vm792 = vcmp.lt.s32.totalorder %v771, %v791
      %vm793 = vcmp.lt.s32.totalorder %v772, %v791
      %vm794 = vcmp.lt.s32.totalorder %v773, %v791
      %vm795 = vcmp.lt.s32.totalorder %v774, %v791
      %vm796 = vcmp.lt.s32.totalorder %v775, %v791
      %vm797 = vcmp.lt.s32.totalorder %v776, %v791
      %vm798 = vcmp.lt.s32.totalorder %v777, %v791
      %vm799 = vcmp.lt.s32.totalorder %v778, %v791
      %vm800 = vcmp.lt.s32.totalorder %v779, %v791
      %vm801 = vcmp.lt.s32.totalorder %v780, %v791
      %vm802 = vcmp.lt.s32.totalorder %v781, %v791
      %vm803 = vcmp.lt.s32.totalorder %v782, %v791
      %vm804 = vcmp.lt.s32.totalorder %v783, %v791
      %vm805 = vcmp.lt.s32.totalorder %v784, %v791
      %vm806 = vcmp.lt.s32.totalorder %v785, %v791
      %vm807 = vcmp.lt.s32.totalorder %v786, %v791
      %vm808 = vcmp.lt.s32.totalorder %v791, 16
      %v809 = vsel %vm808, 1, 0
      %vm810 = vcmp.eq.s32.totalorder %v809, 1
      %vm811 = vmand %vm792, %vm810
      %vm812 = vmand %vm793, %vm810
      %vm813 = vmand %vm794, %vm810
      %vm814 = vmand %vm795, %vm810
      %vm815 = vmand %vm796, %vm810
      %vm816 = vmand %vm797, %vm810
      %vm817 = vmand %vm798, %vm810
      %vm818 = vmand %vm799, %vm810
      %vm819 = vmand %vm800, %vm810
      %vm820 = vmand %vm801, %vm810
      %vm821 = vmand %vm802, %vm810
      %vm822 = vmand %vm803, %vm810
      %vm823 = vmand %vm804, %vm810
      %vm824 = vmand %vm805, %vm810
      %vm825 = vmand %vm806, %vm810
      %vm826 = vmand %vm807, %vm810
      %v827 = vsel %vm811, %v730, 0.0
      %v828 = vsel %vm812, %v731, 0.0
      %v829 = vsel %vm813, %v732, 0.0
      %v830 = vsel %vm814, %v733, 0.0
      %v831 = vsel %vm815, %v734, 0.0
      %v832 = vsel %vm816, %v735, 0.0
      %v833 = vsel %vm817, %v736, 0.0
      %v834 = vsel %vm818, %v737, 0.0
      %v835 = vsel %vm819, %v738, 0.0
      %v836 = vsel %vm820, %v739, 0.0
      %v837 = vsel %vm821, %v740, 0.0
      %v838 = vsel %vm822, %v741, 0.0
      %v839 = vsel %vm823, %v742, 0.0
      %v840 = vsel %vm824, %v743, 0.0
      %v841 = vsel %vm825, %v744, 0.0
      %v842 = vsel %vm826, %v745, 0.0
      %v843 = vadd.f32 %v827, %v828
      %v844 = vadd.f32 %v843, %v829
      %v845 = vadd.f32 %v844, %v830
      %v846 = vadd.f32 %v845, %v831
      %v847 = vadd.f32 %v846, %v832
      %v848 = vadd.f32 %v847, %v833
      %v849 = vadd.f32 %v848, %v834
      %v850 = vadd.f32 %v849, %v835
      %v851 = vadd.f32 %v850, %v836
      %v852 = vadd.f32 %v851, %v837
      %v853 = vadd.f32 %v852, %v838
      %v854 = vadd.f32 %v853, %v839
      %v855 = vadd.f32 %v854, %v840
      %v856 = vadd.f32 %v855, %v841
      %v857 = vadd.f32 %v856, %v842
      %v858 = vrot.slane %v857, 4
      %v859 = vadd.f32 %v857, %v858
      %v860 = vrot.slane %v859, 2
      %v861 = vadd.f32 %v859, %v860
      %v862 = vrot.slane %v861, 1
      %v863 = vadd.f32 %v861, %v862
      %864 = vst [vmem:[#allocation5] sm:$0x1] %v863
    $region29: #{tpu_custom_call.1} parent=1 // pred_fallthru
      _
    %p865 = pneg %p748
    // Predicated region
    $region30: #{tpu_custom_call.1} parent=1 // pred_check
      _
    $region31: #{tpu_custom_call.1} parent=1 // pred_check_branch
      %867 = sbr.rel (%p748) target = $region33
    $region32: #{tpu_custom_call.1} parent=1 // pred_region
      %v868 = vadd.f32 %v730, %v731
      %v869 = vadd.f32 %v868, %v732
      %v870 = vadd.f32 %v869, %v733
      %v871 = vadd.f32 %v870, %v734
      %v872 = vadd.f32 %v871, %v735
      %v873 = vadd.f32 %v872, %v736
      %v874 = vadd.f32 %v873, %v737
      %v875 = vadd.f32 %v874, %v738
      %v876 = vadd.f32 %v875, %v739
      %v877 = vadd.f32 %v876, %v740
      %v878 = vadd.f32 %v877, %v741
      %v879 = vadd.f32 %v878, %v742
      %v880 = vadd.f32 %v879, %v743
      %v881 = vadd.f32 %v880, %v744
      %v882 = vadd.f32 %v881, %v745
      %v883 = vrot.slane %v882, 4
      %v884 = vadd.f32 %v882, %v883
      %v885 = vrot.slane %v884, 2
      %v886 = vadd.f32 %v884, %v885
      %v887 = vrot.slane %v886, 1
      %v888 = vadd.f32 %v886, %v887
      %889 = vst [vmem:[#allocation5] sm:$0x1] %v888
    $region33: #{tpu_custom_call.1} parent=1 // pred_fallthru
      _
    // Predicated region
    $region34: #{tpu_custom_call.1} parent=1 // pred_check
      _
    $region35: #{tpu_custom_call.1} parent=1 // pred_check_branch
      %891 = sbr.rel (0) target = $region37
    $region36: #{tpu_custom_call.1} parent=1 // pred_region
      %s893 = ssub.s32 16, 16
      %894 = vsyncadd [#allocation6], %s893
      %s896 = sshll.u32 [#allocation5], 4
      %s897 = int_to_ptr.vmem [resolvable:$true] %s896
      %899 = dma.vmem_to_hbm [thread:$0]  %s897, 16, %s8, [#allocation6]
    $region37: #{tpu_custom_call.1} parent=1 // pred_fallthru
      _
    // Predicated region
    $region38: #{tpu_custom_call.1} parent=1 // pred_check
      _
    $region39: #{tpu_custom_call.1} parent=1 // pred_check_branch
      %901 = sbr.rel (0) target = $region41
    $region40: #{tpu_custom_call.1} parent=1 // pred_region
      %902 = dma.done [#allocation6], 16
    $region41: #{tpu_custom_call.1} parent=1 // pred_fallthru
      _
    %903 = vsyncpa [#allocation6], 1

</llo_original>
